<compile_context>
chip_gen: v7x
topology: tpu7x:2x2x1
jax: 0.10.0
libtpu: 0.0.40
codegen_flags: <defaults>
</compile_context>

<pallas_src>
import jax
import jax.numpy as jnp
from jax import lax
from jax.experimental import pallas as pl
from jax.experimental.pallas import tpu as pltpu


# -----------------------------------------------------------------------------
# Pallas kernel: Ts steps of the LSTM recurrence per grid step.
#   gx_ref : (Ts, Tb, 4H) bf16  precomputed x_t @ W_ih^T + (b_ih + b_hh)
#   whh_ref: (H, 4H)      bf16  fused recurrent weights (PyTorch W_hh^T)
#   out_ref: (Ts, Tb, H)  f32   hidden state for every step in this block
#   hn_ref : (Tb, H)      f32   running / final h (resident accumulator)
#   cn_ref : (Tb, H)      f32   running / final c (resident accumulator)
# -----------------------------------------------------------------------------
def lstm_kernel(gx_ref, whh_ref, out_ref, hn_ref, cn_ref):
    ts = out_ref.shape[0]
    H = hn_ref.shape[-1]

    # Zero-init the recurrent state only on the first time block of each batch
    # block; hn/cn stay VMEM-resident across the 'arbitrary' time axis.
    @pl.when(pl.program_id(1) == 0)
    def _init():
        hn_ref[...] = jnp.zeros_like(hn_ref)
        cn_ref[...] = jnp.zeros_like(cn_ref)

    whh = whh_ref[...]                                   # (H, 4H) bf16, resident

    def step(t, carry):
        h, c = carry                                     # f32 vreg-resident state
        # One fused MXU matmul per step; bf16 operands, f32 accumulate.
        gates = gx_ref[t].astype(jnp.float32) + jnp.dot(
            h.astype(jnp.bfloat16), whh, preferred_element_type=jnp.float32)
        i_g = jax.nn.sigmoid(gates[:, 0 * H:1 * H])
        f_g = jax.nn.sigmoid(gates[:, 1 * H:2 * H])
        g_g = jnp.tanh(gates[:, 2 * H:3 * H])
        o_g = jax.nn.sigmoid(gates[:, 3 * H:4 * H])
        c_new = f_g * c + i_g * g_g
        h_new = o_g * jnp.tanh(c_new)
        out_ref[t] = h_new.astype(out_ref.dtype)
        return (h_new, c_new)

    # State enters/leaves VMEM once per time block; the recurrence itself stays
    # in vregs.  Unroll capped to keep vreg pressure off the serial path.
    h_f, c_f = lax.fori_loop(0, ts, step, (hn_ref[...], cn_ref[...]),
                             unroll=min(ts, 8))
    hn_ref[...] = h_f
    cn_ref[...] = c_f


def _largest_divisor(n, cap):
    for d in range(min(n, cap), 0, -1):
        if n % d == 0:
            return d
    return 1


def _vmem_limit_bytes(ts, tb, H):
    bf16, f32 = 2, 4
    gx_blk = ts * tb * 4 * H * bf16
    out_blk = ts * tb * H * f32
    whh = H * 4 * H * bf16
    state = 2 * tb * H * f32
    resident = 2 * (gx_blk + out_blk) + whh + state      # x2 = double buffering
    # Floor well above the tiny toy footprint; cap below v7x's 64 MiB physical.
    return int(min(max(4 * resident, 16 << 20), 48 << 20))


def lstm_pallas(gx, whh, *, ts=None, tb=None):
    """Single-layer LSTM recurrence (zero initial state).

    gx : (S, B, 4H) bf16  precomputed input-gate contributions (gate order i,f,g,o)
    whh: (H, 4H)    bf16  fused recurrent weights (PyTorch W_hh transposed)
    Returns (outputs (S, B, H) f32, h_n (B, H) f32, c_n (B, H) f32).
    """
    S, B, G4 = gx.shape
    H = whh.shape[0]
    assert G4 == 4 * H and whh.shape == (H, 4 * H)

    if ts is None:
        ts = _largest_divisor(S, 4)        # time block == in-block unroll span
    if tb is None:
        tb = B                             # v7x production: B // 2 (must be >= 8)
    assert S % ts == 0 and B % tb == 0
    assert tb == B or tb % 8 == 0          # (8,128) tiling rule if batch is split
    n_b, n_t = B // tb, S // ts

    out_shapes = (
        jax.ShapeDtypeStruct((S, B, H), jnp.float32),    # per-step hidden states
        jax.ShapeDtypeStruct((B, H), jnp.float32),       # final h
        jax.ShapeDtypeStruct((B, H), jnp.float32),       # final c
    )

    grid_spec = pltpu.PrefetchScalarGridSpec(
        num_scalar_prefetch=0,
        grid=(n_b, n_t),                                 # (batch, time-blocks)
        in_specs=[
            pl.BlockSpec((ts, tb, 4 * H), lambda b, t: (t, b, 0)),   # gx block
            pl.BlockSpec((H, 4 * H), lambda b, t: (0, 0)),           # W_hh (resident)
        ],
        out_specs=[
            pl.BlockSpec((ts, tb, H), lambda b, t: (t, b, 0)),       # outputs
            pl.BlockSpec((tb, H), lambda b, t: (b, 0)),              # h_n (accumulator)
            pl.BlockSpec((tb, H), lambda b, t: (b, 0)),              # c_n (accumulator)
        ],
    )

    return pl.pallas_call(
        lstm_kernel,
        out_shape=out_shapes,
        grid_spec=grid_spec,
        compiler_params=pltpu.CompilerParams(
            # time axis carries the recurrence -> must stay 'arbitrary';
            # batch axis is embarrassingly parallel (v7x megacore).
            dimension_semantics=("parallel", "arbitrary"),
            vmem_limit_bytes=_vmem_limit_bytes(ts, tb, H)),
    )(gx, whh)


# -----------------------------------------------------------------------------
# Encoder forward: embedding lookup + hoisted input projection (plain JAX glue,
# one big MXU-friendly matmul) followed by the Pallas LSTM recurrence.
# -----------------------------------------------------------------------------
def encoder_forward(tokens, params):
    emb = params["embedding"][tokens]                    # (B, S, E)  XLA gather
    # Hoisted non-recurrent projection, computed f32, emitted time-major
    # lane-dense (S, B, 4H), then cast to bf16 for the kernel input DMA.
    gx = jnp.einsum("bse,ef->sbf", emb.astype(jnp.float32),
                    params["w_ih_t"]) + params["bias"]   # (S, B, 4H) f32
    gx = gx.astype(jnp.bfloat16)

    outputs_tm, h_n, c_n = lstm_pallas(gx, params["w_hh_fused"])

    outputs = jnp.transpose(outputs_tm, (1, 0, 2))       # (B, S, H) batch_first
    hidden = (h_n[None, ...], c_n[None, ...])            # (num_layers=1, B, H) each
    return outputs, hidden


def init_params(key, input_dim, emb_dim, hidden_dim, pad_idx=0):
    k1, k2, k3, k4, k5 = jax.random.split(key, 5)
    H = hidden_dim
    bound = 1.0 / jnp.sqrt(H)

    embedding = jax.random.normal(k1, (input_dim, emb_dim), jnp.float32)
    embedding = embedding.at[pad_idx].set(0.0)           # padding_idx row is zero

    w_ih = jax.random.uniform(k2, (4 * H, emb_dim), jnp.float32, -bound, bound)
    w_hh = jax.random.uniform(k3, (4 * H, H), jnp.float32, -bound, bound)
    b_ih = jax.random.uniform(k4, (4 * H,), jnp.float32, -bound, bound)
    b_hh = jax.random.uniform(k5, (4 * H,), jnp.float32, -bound, bound)

    return {
        "embedding": embedding,
        "w_ih_t": w_ih.T,                                # (E, 4H) f32, hoisted projection
        "w_hh_t": w_hh.T,                                # (H, 4H) f32, reference only
        "w_hh_fused": w_hh.T.astype(jnp.bfloat16),       # (H, 4H) bf16, kernel
        "bias": b_ih + b_hh,                             # (4H,) combined bias
    }


# Pure-JAX f32 reference (lax.scan) used to sanity-check the kernel.
def encoder_reference(tokens, params):
    emb = params["embedding"][tokens]
    x_tm = jnp.transpose(emb, (1, 0, 2)).astype(jnp.float32)
    B = x_tm.shape[1]
    H = params["w_hh_t"].shape[0]

    def step(carry, x_t):
        h, c = carry
        gates = x_t @ params["w_ih_t"] + h @ params["w_hh_t"] + params["bias"]
        i_g = jax.nn.sigmoid(gates[:, 0 * H:1 * H])
        f_g = jax.nn.sigmoid(gates[:, 1 * H:2 * H])
        g_g = jnp.tanh(gates[:, 2 * H:3 * H])
        o_g = jax.nn.sigmoid(gates[:, 3 * H:4 * H])
        c_new = f_g * c + i_g * g_g
        h_new = o_g * jnp.tanh(c_new)
        return (h_new, c_new), h_new

    init = (jnp.zeros((B, H), jnp.float32), jnp.zeros((B, H), jnp.float32))
    (h_n, c_n), outs = jax.lax.scan(step, init, x_tm)
    return jnp.transpose(outs, (1, 0, 2)), (h_n[None], c_n[None])


if __name__ == "__main__":
    # Small shapes consistent with the module: vocab=32, emb=16, hidden=32,
    # batch=2, seq=8, single LSTM layer, pad_idx=0.
    INPUT_DIM, EMB_DIM, HIDDEN_DIM = 32, 16, 32
    BATCH, SEQ, PAD_IDX = 2, 8, 0

    key = jax.random.PRNGKey(0)
    pkey, tkey = jax.random.split(key)
    params = init_params(pkey, INPUT_DIM, EMB_DIM, HIDDEN_DIM, PAD_IDX)
    tokens = jax.random.randint(tkey, (BATCH, SEQ), 0, INPUT_DIM, dtype=jnp.int32)

    fwd = jax.jit(encoder_forward)
    outputs, (h_n, c_n) = fwd(tokens, params)
    jax.block_until_ready((outputs, h_n, c_n))

    # Cross-check against the f32 reference (bf16 gx/W_hh -> loosened tolerance).
    ref_out, (ref_h, ref_c) = encoder_reference(tokens, params)
    assert outputs.shape == (BATCH, SEQ, HIDDEN_DIM)
    assert h_n.shape == (1, BATCH, HIDDEN_DIM) and c_n.shape == (1, BATCH, HIDDEN_DIM)
    assert jnp.allclose(outputs, ref_out, atol=5e-2)
    assert jnp.allclose(h_n, ref_h, atol=5e-2)
    assert jnp.allclose(c_n, ref_c, atol=5e-2)

    print("KERNEL_OK")
</pallas_src>

<mosaic_0001>
module attributes {stable_mosaic.version = 11 : i64} {
  func.func @lstm_kernel(%arg0: i32, %arg1: i32, %arg2: memref<4x2x128xbf16, #tpu.memory_space<vmem>>, %arg3: memref<32x128xbf16, #tpu.memory_space<vmem>>, %arg4: memref<4x2x32xf32, #tpu.memory_space<vmem>>, %arg5: memref<2x32xf32, #tpu.memory_space<vmem>>, %arg6: memref<2x32xf32, #tpu.memory_space<vmem>>) attributes {dimension_semantics = [#tpu.dimension_semantics<parallel>, #tpu.dimension_semantics<arbitrary>], iteration_bounds = array<i64: 1, 2>, scalar_prefetch = 0 : i64, scratch_operands = 0 : i64, tpu.core_type = #tpu.core_type<tc>, window_params = [{transform_indices = @transform_0, window_bounds = array<i64: 4, 2, 128>}, {pipeline_mode = #tpu.pipeline_mode<synchronous>, transform_indices = @transform_1, window_bounds = array<i64: 32, 128>}, {transform_indices = @transform_2, window_bounds = array<i64: 4, 2, 32>}, {transform_indices = @transform_3, window_bounds = array<i64: 2, 32>}, {transform_indices = @transform_4, window_bounds = array<i64: 2, 32>}]} {
    %c0_i32 = arith.constant 0 : i32
    %0 = arith.cmpi eq, %arg1, %c0_i32 : i32
    %1 = arith.extui %0 : i1 to i32
    %c0_i32_0 = arith.constant 0 : i32
    %2 = arith.cmpi ne, %1, %c0_i32_0 : i32
    scf.if %2 {
      %cst_42 = arith.constant 0.000000e+00 : f32
      %152 = vector.broadcast %cst_42 : f32 to vector<2x32xf32>
      %c0_43 = arith.constant 0 : index
      %c0_44 = arith.constant 0 : index
      %153 = vector.load %arg5[%c0_43, %c0_44] : memref<2x32xf32, #tpu.memory_space<vmem>>, vector<2x32xf32>
      tpu.vector_store %arg5[%c0_43, %c0_44], %152 {strides = array<i32>} : memref<2x32xf32, #tpu.memory_space<vmem>>, vector<2x32xf32>,
      %cst_45 = arith.constant 0.000000e+00 : f32
      %154 = vector.broadcast %cst_45 : f32 to vector<2x32xf32>
      %c0_46 = arith.constant 0 : index
      %c0_47 = arith.constant 0 : index
      %155 = vector.load %arg6[%c0_46, %c0_47] : memref<2x32xf32, #tpu.memory_space<vmem>>, vector<2x32xf32>
      tpu.vector_store %arg6[%c0_46, %c0_47], %154 {strides = array<i32>} : memref<2x32xf32, #tpu.memory_space<vmem>>, vector<2x32xf32>,
    } else {
    }
    %c0 = arith.constant 0 : index
    %c0_1 = arith.constant 0 : index
    %3 = vector.load %arg3[%c0, %c0_1] : memref<32x128xbf16, #tpu.memory_space<vmem>>, vector<32x128xbf16>
    %c0_2 = arith.constant 0 : index
    %c0_3 = arith.constant 0 : index
    %4 = vector.load %arg5[%c0_2, %c0_3] : memref<2x32xf32, #tpu.memory_space<vmem>>, vector<2x32xf32>
    %c0_4 = arith.constant 0 : index
    %c0_5 = arith.constant 0 : index
    %5 = vector.load %arg6[%c0_4, %c0_5] : memref<2x32xf32, #tpu.memory_space<vmem>>, vector<2x32xf32>
    %c0_i32_6 = arith.constant 0 : i32
    %6 = arith.index_cast %c0_i32_6 : i32 to index
    %c0_7 = arith.constant 0 : index
    %c0_8 = arith.constant 0 : index
    %7 = vector.load %arg2[%6, %c0_7, %c0_8] : memref<4x2x128xbf16, #tpu.memory_space<vmem>>, vector<1x2x128xbf16>
    %8 = vector.shape_cast %7 : vector<1x2x128xbf16> to vector<2x128xbf16>
    %9 = arith.extf %8 : vector<2x128xbf16> to vector<2x128xf32>
    %10 = arith.truncf %4 : vector<2x32xf32> to vector<2x32xbf16>
    %cst = arith.constant dense<0.000000e+00> : vector<2x128xf32>
    %11 = tpu.matmul %10, %3, %cst {dimension_numbers = #tpu.dot_dimension_numbers<[1], [0], [0], [1], [0, 0, 1, 1], [], []>} : vector<2x32xbf16>, vector<32x128xbf16>, vector<2x128xf32> -> vector<2x128xf32>
    %12 = arith.addf %9, %11 : vector<2x128xf32>
    %13 = vector.extract_strided_slice %12 {offsets = [0, 0], sizes = [2, 32], strides = [1, 1]} : vector<2x128xf32> to vector<2x32xf32>
    %14 = arith.negf %13 : vector<2x32xf32>
    %15 = math.exp %14 : vector<2x32xf32>
    %cst_9 = arith.constant 1.000000e+00 : f32
    %16 = vector.broadcast %cst_9 : f32 to vector<2x32xf32>
    %17 = arith.addf %16, %15 : vector<2x32xf32>
    %18 = arith.divf %16, %17 : vector<2x32xf32>
    %19 = vector.extract_strided_slice %12 {offsets = [0, 32], sizes = [2, 32], strides = [1, 1]} : vector<2x128xf32> to vector<2x32xf32>
    %20 = arith.negf %19 : vector<2x32xf32>
    %21 = math.exp %20 : vector<2x32xf32>
    %cst_10 = arith.constant 1.000000e+00 : f32
    %22 = vector.broadcast %cst_10 : f32 to vector<2x32xf32>
    %23 = arith.addf %22, %21 : vector<2x32xf32>
    %24 = arith.divf %22, %23 : vector<2x32xf32>
    %25 = vector.extract_strided_slice %12 {offsets = [0, 64], sizes = [2, 32], strides = [1, 1]} : vector<2x128xf32> to vector<2x32xf32>
    %26 = math.tanh %25 : vector<2x32xf32>
    %27 = vector.extract_strided_slice %12 {offsets = [0, 96], sizes = [2, 32], strides = [1, 1]} : vector<2x128xf32> to vector<2x32xf32>
    %28 = arith.negf %27 : vector<2x32xf32>
    %29 = math.exp %28 : vector<2x32xf32>
    %cst_11 = arith.constant 1.000000e+00 : f32
    %30 = vector.broadcast %cst_11 : f32 to vector<2x32xf32>
    %31 = arith.addf %30, %29 : vector<2x32xf32>
    %32 = arith.divf %30, %31 : vector<2x32xf32>
    %33 = arith.mulf %24, %5 : vector<2x32xf32>
    %34 = arith.mulf %18, %26 : vector<2x32xf32>
    %35 = arith.addf %33, %34 : vector<2x32xf32>
    %36 = math.tanh %35 : vector<2x32xf32>
    %37 = arith.mulf %32, %36 : vector<2x32xf32>
    %38 = arith.index_cast %c0_i32_6 : i32 to index
    %c0_12 = arith.constant 0 : index
    %c0_13 = arith.constant 0 : index
    %39 = vector.load %arg4[%38, %c0_12, %c0_13] : memref<4x2x32xf32, #tpu.memory_space<vmem>>, vector<1x2x32xf32>
    %40 = vector.shape_cast %39 : vector<1x2x32xf32> to vector<2x32xf32>
    %41 = vector.shape_cast %37 : vector<2x32xf32> to vector<1x2x32xf32>
    tpu.vector_store %arg4[%38, %c0_12, %c0_13], %41 {strides = array<i32>} : memref<4x2x32xf32, #tpu.memory_space<vmem>>, vector<1x2x32xf32>,
    %c1_i32 = arith.constant 1 : i32
    %42 = arith.index_cast %c1_i32 : i32 to index
    %c0_14 = arith.constant 0 : index
    %c0_15 = arith.constant 0 : index
    %43 = vector.load %arg2[%42, %c0_14, %c0_15] : memref<4x2x128xbf16, #tpu.memory_space<vmem>>, vector<1x2x128xbf16>
    %44 = vector.shape_cast %43 : vector<1x2x128xbf16> to vector<2x128xbf16>
    %45 = arith.extf %44 : vector<2x128xbf16> to vector<2x128xf32>
    %46 = arith.truncf %37 : vector<2x32xf32> to vector<2x32xbf16>
    %cst_16 = arith.constant dense<0.000000e+00> : vector<2x128xf32>
    %47 = tpu.matmul %46, %3, %cst_16 {dimension_numbers = #tpu.dot_dimension_numbers<[1], [0], [0], [1], [0, 0, 1, 1], [], []>} : vector<2x32xbf16>, vector<32x128xbf16>, vector<2x128xf32> -> vector<2x128xf32>
    %48 = arith.addf %45, %47 : vector<2x128xf32>
    %49 = vector.extract_strided_slice %48 {offsets = [0, 0], sizes = [2, 32], strides = [1, 1]} : vector<2x128xf32> to vector<2x32xf32>
    %50 = arith.negf %49 : vector<2x32xf32>
    %51 = math.exp %50 : vector<2x32xf32>
    %cst_17 = arith.constant 1.000000e+00 : f32
    %52 = vector.broadcast %cst_17 : f32 to vector<2x32xf32>
    %53 = arith.addf %52, %51 : vector<2x32xf32>
    %54 = arith.divf %52, %53 : vector<2x32xf32>
    %55 = vector.extract_strided_slice %48 {offsets = [0, 32], sizes = [2, 32], strides = [1, 1]} : vector<2x128xf32> to vector<2x32xf32>
    %56 = arith.negf %55 : vector<2x32xf32>
    %57 = math.exp %56 : vector<2x32xf32>
    %cst_18 = arith.constant 1.000000e+00 : f32
    %58 = vector.broadcast %cst_18 : f32 to vector<2x32xf32>
    %59 = arith.addf %58, %57 : vector<2x32xf32>
    %60 = arith.divf %58, %59 : vector<2x32xf32>
    %61 = vector.extract_strided_slice %48 {offsets = [0, 64], sizes = [2, 32], strides = [1, 1]} : vector<2x128xf32> to vector<2x32xf32>
    %62 = math.tanh %61 : vector<2x32xf32>
    %63 = vector.extract_strided_slice %48 {offsets = [0, 96], sizes = [2, 32], strides = [1, 1]} : vector<2x128xf32> to vector<2x32xf32>
    %64 = arith.negf %63 : vector<2x32xf32>
    %65 = math.exp %64 : vector<2x32xf32>
    %cst_19 = arith.constant 1.000000e+00 : f32
    %66 = vector.broadcast %cst_19 : f32 to vector<2x32xf32>
    %67 = arith.addf %66, %65 : vector<2x32xf32>
    %68 = arith.divf %66, %67 : vector<2x32xf32>
    %69 = arith.mulf %60, %35 : vector<2x32xf32>
    %70 = arith.mulf %54, %62 : vector<2x32xf32>
    %71 = arith.addf %69, %70 : vector<2x32xf32>
    %72 = math.tanh %71 : vector<2x32xf32>
    %73 = arith.mulf %68, %72 : vector<2x32xf32>
    %74 = arith.index_cast %c1_i32 : i32 to index
    %c0_20 = arith.constant 0 : index
    %c0_21 = arith.constant 0 : index
    %75 = vector.load %arg4[%74, %c0_20, %c0_21] : memref<4x2x32xf32, #tpu.memory_space<vmem>>, vector<1x2x32xf32>
    %76 = vector.shape_cast %75 : vector<1x2x32xf32> to vector<2x32xf32>
    %77 = vector.shape_cast %73 : vector<2x32xf32> to vector<1x2x32xf32>
    tpu.vector_store %arg4[%74, %c0_20, %c0_21], %77 {strides = array<i32>} : memref<4x2x32xf32, #tpu.memory_space<vmem>>, vector<1x2x32xf32>,
    %c2_i32 = arith.constant 2 : i32
    %78 = arith.index_cast %c2_i32 : i32 to index
    %c0_22 = arith.constant 0 : index
    %c0_23 = arith.constant 0 : index
    %79 = vector.load %arg2[%78, %c0_22, %c0_23] : memref<4x2x128xbf16, #tpu.memory_space<vmem>>, vector<1x2x128xbf16>
    %80 = vector.shape_cast %79 : vector<1x2x128xbf16> to vector<2x128xbf16>
    %81 = arith.extf %80 : vector<2x128xbf16> to vector<2x128xf32>
    %82 = arith.truncf %73 : vector<2x32xf32> to vector<2x32xbf16>
    %cst_24 = arith.constant dense<0.000000e+00> : vector<2x128xf32>
    %83 = tpu.matmul %82, %3, %cst_24 {dimension_numbers = #tpu.dot_dimension_numbers<[1], [0], [0], [1], [0, 0, 1, 1], [], []>} : vector<2x32xbf16>, vector<32x128xbf16>, vector<2x128xf32> -> vector<2x128xf32>
    %84 = arith.addf %81, %83 : vector<2x128xf32>
    %85 = vector.extract_strided_slice %84 {offsets = [0, 0], sizes = [2, 32], strides = [1, 1]} : vector<2x128xf32> to vector<2x32xf32>
    %86 = arith.negf %85 : vector<2x32xf32>
    %87 = math.exp %86 : vector<2x32xf32>
    %cst_25 = arith.constant 1.000000e+00 : f32
    %88 = vector.broadcast %cst_25 : f32 to vector<2x32xf32>
    %89 = arith.addf %88, %87 : vector<2x32xf32>
    %90 = arith.divf %88, %89 : vector<2x32xf32>
    %91 = vector.extract_strided_slice %84 {offsets = [0, 32], sizes = [2, 32], strides = [1, 1]} : vector<2x128xf32> to vector<2x32xf32>
    %92 = arith.negf %91 : vector<2x32xf32>
    %93 = math.exp %92 : vector<2x32xf32>
    %cst_26 = arith.constant 1.000000e+00 : f32
    %94 = vector.broadcast %cst_26 : f32 to vector<2x32xf32>
    %95 = arith.addf %94, %93 : vector<2x32xf32>
    %96 = arith.divf %94, %95 : vector<2x32xf32>
    %97 = vector.extract_strided_slice %84 {offsets = [0, 64], sizes = [2, 32], strides = [1, 1]} : vector<2x128xf32> to vector<2x32xf32>
    %98 = math.tanh %97 : vector<2x32xf32>
    %99 = vector.extract_strided_slice %84 {offsets = [0, 96], sizes = [2, 32], strides = [1, 1]} : vector<2x128xf32> to vector<2x32xf32>
    %100 = arith.negf %99 : vector<2x32xf32>
    %101 = math.exp %100 : vector<2x32xf32>
    %cst_27 = arith.constant 1.000000e+00 : f32
    %102 = vector.broadcast %cst_27 : f32 to vector<2x32xf32>
    %103 = arith.addf %102, %101 : vector<2x32xf32>
    %104 = arith.divf %102, %103 : vector<2x32xf32>
    %105 = arith.mulf %96, %71 : vector<2x32xf32>
    %106 = arith.mulf %90, %98 : vector<2x32xf32>
    %107 = arith.addf %105, %106 : vector<2x32xf32>
    %108 = math.tanh %107 : vector<2x32xf32>
    %109 = arith.mulf %104, %108 : vector<2x32xf32>
    %110 = arith.index_cast %c2_i32 : i32 to index
    %c0_28 = arith.constant 0 : index
    %c0_29 = arith.constant 0 : index
    %111 = vector.load %arg4[%110, %c0_28, %c0_29] : memref<4x2x32xf32, #tpu.memory_space<vmem>>, vector<1x2x32xf32>
    %112 = vector.shape_cast %111 : vector<1x2x32xf32> to vector<2x32xf32>
    %113 = vector.shape_cast %109 : vector<2x32xf32> to vector<1x2x32xf32>
    tpu.vector_store %arg4[%110, %c0_28, %c0_29], %113 {strides = array<i32>} : memref<4x2x32xf32, #tpu.memory_space<vmem>>, vector<1x2x32xf32>,
    %c3_i32 = arith.constant 3 : i32
    %114 = arith.index_cast %c3_i32 : i32 to index
    %c0_30 = arith.constant 0 : index
    %c0_31 = arith.constant 0 : index
    %115 = vector.load %arg2[%114, %c0_30, %c0_31] : memref<4x2x128xbf16, #tpu.memory_space<vmem>>, vector<1x2x128xbf16>
    %116 = vector.shape_cast %115 : vector<1x2x128xbf16> to vector<2x128xbf16>
    %117 = arith.extf %116 : vector<2x128xbf16> to vector<2x128xf32>
    %118 = arith.truncf %109 : vector<2x32xf32> to vector<2x32xbf16>
    %cst_32 = arith.constant dense<0.000000e+00> : vector<2x128xf32>
    %119 = tpu.matmul %118, %3, %cst_32 {dimension_numbers = #tpu.dot_dimension_numbers<[1], [0], [0], [1], [0, 0, 1, 1], [], []>} : vector<2x32xbf16>, vector<32x128xbf16>, vector<2x128xf32> -> vector<2x128xf32>
    %120 = arith.addf %117, %119 : vector<2x128xf32>
    %121 = vector.extract_strided_slice %120 {offsets = [0, 0], sizes = [2, 32], strides = [1, 1]} : vector<2x128xf32> to vector<2x32xf32>
    %122 = arith.negf %121 : vector<2x32xf32>
    %123 = math.exp %122 : vector<2x32xf32>
    %cst_33 = arith.constant 1.000000e+00 : f32
    %124 = vector.broadcast %cst_33 : f32 to vector<2x32xf32>
    %125 = arith.addf %124, %123 : vector<2x32xf32>
    %126 = arith.divf %124, %125 : vector<2x32xf32>
    %127 = vector.extract_strided_slice %120 {offsets = [0, 32], sizes = [2, 32], strides = [1, 1]} : vector<2x128xf32> to vector<2x32xf32>
    %128 = arith.negf %127 : vector<2x32xf32>
    %129 = math.exp %128 : vector<2x32xf32>
    %cst_34 = arith.constant 1.000000e+00 : f32
    %130 = vector.broadcast %cst_34 : f32 to vector<2x32xf32>
    %131 = arith.addf %130, %129 : vector<2x32xf32>
    %132 = arith.divf %130, %131 : vector<2x32xf32>
    %133 = vector.extract_strided_slice %120 {offsets = [0, 64], sizes = [2, 32], strides = [1, 1]} : vector<2x128xf32> to vector<2x32xf32>
    %134 = math.tanh %133 : vector<2x32xf32>
    %135 = vector.extract_strided_slice %120 {offsets = [0, 96], sizes = [2, 32], strides = [1, 1]} : vector<2x128xf32> to vector<2x32xf32>
    %136 = arith.negf %135 : vector<2x32xf32>
    %137 = math.exp %136 : vector<2x32xf32>
    %cst_35 = arith.constant 1.000000e+00 : f32
    %138 = vector.broadcast %cst_35 : f32 to vector<2x32xf32>
    %139 = arith.addf %138, %137 : vector<2x32xf32>
    %140 = arith.divf %138, %139 : vector<2x32xf32>
    %141 = arith.mulf %132, %107 : vector<2x32xf32>
    %142 = arith.mulf %126, %134 : vector<2x32xf32>
    %143 = arith.addf %141, %142 : vector<2x32xf32>
    %144 = math.tanh %143 : vector<2x32xf32>
    %145 = arith.mulf %140, %144 : vector<2x32xf32>
    %146 = arith.index_cast %c3_i32 : i32 to index
    %c0_36 = arith.constant 0 : index
    %c0_37 = arith.constant 0 : index
    %147 = vector.load %arg4[%146, %c0_36, %c0_37] : memref<4x2x32xf32, #tpu.memory_space<vmem>>, vector<1x2x32xf32>
    %148 = vector.shape_cast %147 : vector<1x2x32xf32> to vector<2x32xf32>
    %149 = vector.shape_cast %145 : vector<2x32xf32> to vector<1x2x32xf32>
    tpu.vector_store %arg4[%146, %c0_36, %c0_37], %149 {strides = array<i32>} : memref<4x2x32xf32, #tpu.memory_space<vmem>>, vector<1x2x32xf32>,
    %c4_i32 = arith.constant 4 : i32
    %c0_38 = arith.constant 0 : index
    %c0_39 = arith.constant 0 : index
    %150 = vector.load %arg5[%c0_38, %c0_39] : memref<2x32xf32, #tpu.memory_space<vmem>>, vector<2x32xf32>
    tpu.vector_store %arg5[%c0_38, %c0_39], %145 {strides = array<i32>} : memref<2x32xf32, #tpu.memory_space<vmem>>, vector<2x32xf32>,
    %c0_40 = arith.constant 0 : index
    %c0_41 = arith.constant 0 : index
    %151 = vector.load %arg6[%c0_40, %c0_41] : memref<2x32xf32, #tpu.memory_space<vmem>>, vector<2x32xf32>
    tpu.vector_store %arg6[%c0_40, %c0_41], %143 {strides = array<i32>} : memref<2x32xf32, #tpu.memory_space<vmem>>, vector<2x32xf32>,
    return
  }
  func.func @transform_0(%arg0: i32, %arg1: i32) -> (i32, i32, i32) {
    %c0_i32 = arith.constant 0 : i32
    %c0_i32_0 = arith.constant 0 : i32
    return %arg1, %arg0, %c0_i32 : i32, i32, i32
  }
  func.func @transform_1(%arg0: i32, %arg1: i32) -> (i32, i32) {
    %c0_i32 = arith.constant 0 : i32
    %c0_i32_0 = arith.constant 0 : i32
    %c0_i32_1 = arith.constant 0 : i32
    return %c0_i32, %c0_i32_0 : i32, i32
  }
  func.func @transform_2(%arg0: i32, %arg1: i32) -> (i32, i32, i32) {
    %c0_i32 = arith.constant 0 : i32
    %c0_i32_0 = arith.constant 0 : i32
    return %arg1, %arg0, %c0_i32 : i32, i32, i32
  }
  func.func @transform_3(%arg0: i32, %arg1: i32) -> (i32, i32) {
    %c0_i32 = arith.constant 0 : i32
    %c0_i32_0 = arith.constant 0 : i32
    return %arg0, %c0_i32 : i32, i32
  }
  func.func @transform_4(%arg0: i32, %arg1: i32) -> (i32, i32) {
    %c0_i32 = arith.constant 0 : i32
    %c0_i32_0 = arith.constant 0 : i32
    return %arg0, %c0_i32 : i32, i32
  }
}

</mosaic_0001>

<llo_original>
// kernel: encoder_forward.1
$region0: #{encoder_forward.1}
  #allocation0 [shape = 'u32[]', space=smem, size = 0x4, offset = 0x4, fixed_abs, tag = 'smem constant byte address 0x4 - core index']
  #allocation1 [shape = 'u32[144,128]{1,0:T(1,128)}', space=vmem, size = 0x12000, scoped, tag = 'internal scratch']
  %s0 = inlined_call_operand.vmem [shape: bf16[8,2,128], index: 0, kind: input, shape index: {}]
  %s1 = inlined_call_operand.vmem [shape: bf16[32,128], index: 1, kind: input, shape index: {}]
  %s2 = inlined_call_operand.vmem [shape: f32[8,2,32], index: 2, kind: output, shape index: {0}]
  %s3 = inlined_call_operand.hbm [shape: f32[2,32], index: 3, kind: output, shape index: {1}]
  %s4 = inlined_call_operand.hbm [shape: f32[2,32], index: 4, kind: output, shape index: {2}]
  %5 = xla_tuple %s2, %s3, %s4
  %s6 = sld [smem:[#allocation0]]
  $region61: #{encoder_forward.1} parent=0
    _
  %s8 = ssub.s32 1, %s6
  %s9 = scalar_select 0, %s8, %s6
  $region1: #{encoder_forward.1} parent=0
    #allocation2 [shape = 'u8[1024]{0}', space=vmem, size = 0x400, scoped, tag = 'output window, operand 1, single buffered']
    #allocation3 [shape = 's32[2]{0}', space=sflag, size = 0x8, scoped, tag = 'scoped memory for encoder_forward.1']
    #allocation4 [shape = 'u8[1024]{0}', space=vmem, size = 0x400, scoped, tag = 'output window, operand 2, single buffered']
    #allocation5 [shape = 's32[1]{0}', space=sflag, size = 0x4, scoped, tag = 'scoped memory for encoder_forward.1']
    %10 = vsyncpa [#allocation3], 0
    %11 = vsyncpa [#allocation5], 0
    loop: start=0, step=1, limit=4
    $region2: #{encoder_forward.1} parent=1 // loop_pre_header
      _
    $region3: #{encoder_forward.1} parent=1 // loop_header
      %s13 = sphi 0, %s17
      %p14 = scmp.ge.s32.totalorder %s13, 4
      %s20 = sphi 0, %s32
      %s21 = sphi 0, %s28
      %s22 = sphi 0, %s20
      %s23 = sphi 0, %s21
      %s24 = sphi 0, %s22
      %s25 = sphi 0, %s23
      %s37 = sphi 0, %s39
      %s40 = sphi 0, %s37
      %s41 = sphi 0, %s40
      %s57 = sphi 0, %s41
      %s61 = sphi 0, %s61
      %s63 = sphi 0, %s61
      %s64 = sphi 0, %s63
      %s78 = sphi 0, %s64
      %s86 = sphi 0, %s88
      %s89 = sphi 0, %s86
      %s90 = sphi 0, %s89
      %s106 = sphi 0, %s90
      %s112 = sphi 0, %s114
      %s115 = sphi 0, %s112
      %s116 = sphi 0, %s115
      %s132 = sphi 0, %s116
      %s138 = sphi 0, %s140
      %s141 = sphi 0, %s138
      %s142 = sphi 0, %s141
      %s158 = sphi 0, %s142
    $region4: #{encoder_forward.1} parent=1 // loop_header_branch
      %16 = sbr.rel (%p14) target = $region8
    $region5: #{encoder_forward.1} parent=1 // loop_body
      %s18 = ssub.s32 %s13, 1
      %s19 = ssub.s32 %s13, 2
      %s26 = sadd.s32 1, %s21
      %p27 = scmp.ge.s32.totalorder %s26, 2
      %s28 = scalar_select %p27, 0, %s26
      %s29 = sadd.s32 1, %s20
      %s30 = scalar_select %p27, %s29, %s20
      %p31 = scmp.ge.s32.totalorder %s30, 1
      %s32 = scalar_select %p31, 0, %s30
      %s33 = ssub.s32 %s21, %s28
      %s34 = ssub.s32 %s20, %s32
      %s35 = sor.u32 %s33, %s34
      %p36 = scmp.eq.s32.totalorder %s35, 0
      %s38 = sadd.s32 %s37, 1
      %s39 = scalar_select %p36, %s37, %s38
      %p42 = pneg %p36
      %p43 = scmp.eq.s32.totalorder %s13, 1
      %p44 = por %p42, %p43
      %p45 = scmp.ne.s32.totalorder %s37, %s40
      %p46 = scmp.eq.s32.totalorder %s13, 0
      %p47 = por %p45, %p46
      %p48 = scmp.ne.s32.totalorder %s37, %s40
      %p49 = scmp.eq.s32.totalorder %s18, 1
      %p50 = por %p48, %p49
      %p51 = scmp.ne.s32.totalorder %s40, %s41
      %p52 = scmp.eq.s32.totalorder %s18, 0
      %p53 = por %p51, %p52
      %p54 = scmp.ne.s32.totalorder %s40, %s41
      %p55 = scmp.eq.s32.totalorder %s19, 1
      %p56 = por %p54, %p55
      %p58 = scmp.ne.s32.totalorder %s41, %s57
      %p59 = scmp.eq.s32.totalorder %s19, 0
      %p60 = por %p58, %p59
      %s62 = sadd.s32 %s61, 1
      %p65 = scmp.eq.s32.totalorder %s13, 1
      %p66 = scmp.ne.s32.totalorder %s61, %s63
      %p67 = scmp.eq.s32.totalorder %s13, 0
      %p68 = por %p66, %p67
      %p69 = scmp.ne.s32.totalorder %s61, %s63
      %p70 = scmp.eq.s32.totalorder %s18, 1
      %p71 = por %p69, %p70
      %p72 = scmp.ne.s32.totalorder %s63, %s64
      %p73 = scmp.eq.s32.totalorder %s18, 0
      %p74 = por %p72, %p73
      %p75 = scmp.ne.s32.totalorder %s63, %s64
      %p76 = scmp.eq.s32.totalorder %s19, 1
      %p77 = por %p75, %p76
      %p79 = scmp.ne.s32.totalorder %s64, %s78
      %p80 = scmp.eq.s32.totalorder %s19, 0
      %p81 = por %p79, %p80
      %s82 = ssub.s32 %s21, %s28
      %s83 = ssub.s32 %s20, %s32
      %s84 = sor.u32 %s82, %s83
      %p85 = scmp.eq.s32.totalorder %s84, 0
      %s87 = sadd.s32 %s86, 1
      %s88 = scalar_select %p85, %s86, %s87
      %p91 = pneg %p85
      %p92 = scmp.eq.s32.totalorder %s13, 1
      %p93 = por %p91, %p92
      %p94 = scmp.ne.s32.totalorder %s86, %s89
      %p95 = scmp.eq.s32.totalorder %s13, 0
      %p96 = por %p94, %p95
      %p97 = scmp.ne.s32.totalorder %s86, %s89
      %p98 = scmp.eq.s32.totalorder %s18, 1
      %p99 = por %p97, %p98
      %p100 = scmp.ne.s32.totalorder %s89, %s90
      %p101 = scmp.eq.s32.totalorder %s18, 0
      %p102 = por %p100, %p101
      %p103 = scmp.ne.s32.totalorder %s89, %s90
      %p104 = scmp.eq.s32.totalorder %s19, 1
      %p105 = por %p103, %p104
      %p107 = scmp.ne.s32.totalorder %s90, %s106
      %p108 = scmp.eq.s32.totalorder %s19, 0
      %p109 = por %p107, %p108
      %s110 = ssub.s32 %s20, %s32
      %p111 = scmp.eq.s32.totalorder %s110, 0
      %s113 = sadd.s32 %s112, 1
      %s114 = scalar_select %p111, %s112, %s113
      %p117 = pneg %p111
      %p118 = scmp.eq.s32.totalorder %s13, 1
      %p119 = por %p117, %p118
      %p120 = scmp.ne.s32.totalorder %s112, %s115
      %p121 = scmp.eq.s32.totalorder %s13, 0
      %p122 = por %p120, %p121
      %p123 = scmp.ne.s32.totalorder %s112, %s115
      %p124 = scmp.eq.s32.totalorder %s18, 1
      %p125 = por %p123, %p124
      %p126 = scmp.ne.s32.totalorder %s115, %s116
      %p127 = scmp.eq.s32.totalorder %s18, 0
      %p128 = por %p126, %p127
      %p129 = scmp.ne.s32.totalorder %s115, %s116
      %p130 = scmp.eq.s32.totalorder %s19, 1
      %p131 = por %p129, %p130
      %p133 = scmp.ne.s32.totalorder %s116, %s132
      %p134 = scmp.eq.s32.totalorder %s19, 0
      %p135 = por %p133, %p134
      %s136 = ssub.s32 %s20, %s32
      %p137 = scmp.eq.s32.totalorder %s136, 0
      %s139 = sadd.s32 %s138, 1
      %s140 = scalar_select %p137, %s138, %s139
      %p143 = pneg %p137
      %p144 = scmp.eq.s32.totalorder %s13, 1
      %p145 = por %p143, %p144
      %p146 = scmp.ne.s32.totalorder %s138, %s141
      %p147 = scmp.eq.s32.totalorder %s13, 0
      %p148 = por %p146, %p147
      %p149 = scmp.ne.s32.totalorder %s138, %s141
      %p150 = scmp.eq.s32.totalorder %s18, 1
      %p151 = por %p149, %p150
      %p152 = scmp.ne.s32.totalorder %s141, %s142
      %p153 = scmp.eq.s32.totalorder %s18, 0
      %p154 = por %p152, %p153
      %p155 = scmp.ne.s32.totalorder %s141, %s142
      %p156 = scmp.eq.s32.totalorder %s19, 1
      %p157 = por %p155, %p156
      %p159 = scmp.ne.s32.totalorder %s142, %s158
      %p160 = scmp.eq.s32.totalorder %s19, 0
      %p161 = por %p159, %p160
      %p162 = scmp.le.s32.totalorder 1, %s13
      %p163 = scmp.lt.s32.totalorder %s13, 3
      %p164 = pnand %p162, %p163
      %p165 = pneg %p164
      // Predicated region
      $region9: #{encoder_forward.1} parent=5 // pred_check
        _
      $region10: #{encoder_forward.1} parent=5 // pred_check_branch
        %167 = sbr.rel (%p164) target = $region12
      $region11: #{encoder_forward.1} parent=5 // pred_region
        %s168 = ssub.s32 %s13, 1
        // Predicated region
        $region13: #{encoder_forward.1} parent=11 // pred_check
          %p169 = pneg %p74
        $region14: #{encoder_forward.1} parent=11 // pred_check_branch
          %171 = sbr.rel (%p169) target = $region16
        $region15: #{encoder_forward.1} parent=11 // pred_region
          _
        $region16: #{encoder_forward.1} parent=11 // pred_fallthru
          _
      $region12: #{encoder_forward.1} parent=5 // pred_fallthru
        _
      %p172 = scmp.lt.s32.totalorder %s13, 2
      // Predicated region
      $region17: #{encoder_forward.1} parent=5 // pred_check
        %p173 = pneg %p172
      $region18: #{encoder_forward.1} parent=5 // pred_check_branch
        %175 = sbr.rel (%p173) target = $region20
      $region19: #{encoder_forward.1} parent=5 // pred_region
        // Predicated region
        $region21: #{encoder_forward.1} parent=19 // pred_check
          %p176 = pneg %p47
        $region22: #{encoder_forward.1} parent=19 // pred_check_branch
          %178 = sbr.rel (%p176) target = $region24
        $region23: #{encoder_forward.1} parent=19 // pred_region
          %s179 = smul.u32 4, %s21
          %p180 = scmp.lt.s32.totalorder %s179, 7
          %s181 = scalar_select %p180, %s179, 7
          %p182 = scmp.lt.s32.totalorder %s20, 0
          %s183 = scalar_select %p182, %s20, 0
          %s184 = sadd.s32 %s183, %s181
          %s185 = scalar_lea.vmem %s0, %s184
          %s186 = smul.u32 4, %s21
        $region24: #{encoder_forward.1} parent=19 // pred_fallthru
          _
      $region20: #{encoder_forward.1} parent=5 // pred_fallthru
        _
      %p187 = scmp.le.s32.totalorder 1, %s13
      %p188 = scmp.lt.s32.totalorder %s13, 3
      %p189 = pnand %p187, %p188
      %p190 = pneg %p189
      // Predicated region
      $region25: #{encoder_forward.1} parent=5 // pred_check
        _
      $region26: #{encoder_forward.1} parent=5 // pred_check_branch
        %192 = sbr.rel (%p189) target = $region28
      $region27: #{encoder_forward.1} parent=5 // pred_region
        %s193 = ssub.s32 %s13, 1
        %s194 = smul.u32 4, %s23
        %p195 = scmp.lt.s32.totalorder %s194, 7
        %s196 = scalar_select %p195, %s194, 7
        %p197 = scmp.lt.s32.totalorder %s22, 0
        %s198 = scalar_select %p197, %s22, 0
        %s199 = sadd.s32 %s198, %s196
        %s200 = scalar_lea.vmem %s0, %s199
        %p201 = pneg %p53
        %p202 = pneg %p50
        %p203 = pneg %p74
        %p204 = pneg %p71
        %p205 = pneg %p102
        %p206 = pneg %p99
        %s207 = smul.u32 4, %s23
        %p208 = scmp.lt.s32.totalorder %s207, 7
        %s209 = scalar_select %p208, %s207, 7
        %p210 = scmp.lt.s32.totalorder %s22, 0
        %s211 = scalar_select %p210, %s22, 0
        %s212 = sadd.s32 %s211, %s209
        %s213 = smul.addr %s212, 2
        %s214 = scalar_lea.vmem %s2, %s213
        %p215 = pneg %p128
        %p216 = pneg %p125
        %p217 = pneg %p154
        %p218 = pneg %p151
        %s219 = smul.u32 4, %s23
        %p220 = scmp.lt.s32.totalorder %s219, 7
        %s221 = scalar_select %p220, %s219, 7
        %p222 = scmp.lt.s32.totalorder %s22, 0
        %s223 = scalar_select %p222, %s22, 0
        %s224 = sadd.s32 %s223, %s221
        %s225 = scalar_lea.vmem %s0, %s224
        %s226 = smul.u32 4, %s23
        %s227 = smul.u32 4, %s23
        %p228 = scmp.lt.s32.totalorder %s227, 7
        %s229 = scalar_select %p228, %s227, 7
        %p230 = scmp.lt.s32.totalorder %s22, 0
        %s231 = scalar_select %p230, %s22, 0
        %s232 = sadd.s32 %s231, %s229
        %s233 = smul.addr %s232, 2
        %s234 = scalar_lea.vmem %s2, %s233
        %s235 = smul.u32 4, %s23
        %p237 = scmp.eq.s32.totalorder %s23, 0
        // Predicated region
        $region29: #{encoder_forward.1} parent=27 // pred_check
          %p238 = pneg %p237
        $region30: #{encoder_forward.1} parent=27 // pred_check_branch
          %240 = sbr.rel (%p238) target = $region32
        $region31: #{encoder_forward.1} parent=27 // pred_region
          %vm241 = vcmask 254976
          %242 = vst.msk [vmem:[#allocation2] sm:$0x3] %vm241, 0.0
          %243 = vst.msk [vmem:[#allocation4] sm:$0x3] %vm241, 0.0
        $region32: #{encoder_forward.1} parent=27 // pred_fallthru
          _
        %v244 = vld [vmem:[%s1] sm:$0xf]
        %v245 = vld [vmem:[%s1 + $0x4] sm:$0xf]
        %v246 = vld [vmem:[%s1 + $0x8] sm:$0xf]
        %v247 = vld [vmem:[%s1 + $0xc] sm:$0xf]
        %v248 = vld [vmem:[#allocation2] sm:$0x3]
        %v249 = vld [vmem:[#allocation4] sm:$0x3]
        %v250 = vld [vmem:[%s225] sm:$0x1]
        %v251 = vunpack.c.l.bf16 %v250
        %v252 = vpack.c.bf16 %v248, %v248
        %v257 = vunpack.c.l.b16 %v244
        %v258 = vunpack.c.l.b16 %v245
        %v259 = vunpack.c.l.b16 %v246
        %v260 = vunpack.c.l.b16 %v247
        %v261 = vpack.c.b16 %v258, %v257
        %v262 = vpack.c.b16 %v260, %v259
        %vm265 = vcmask 261120
        %v267 = vsel %vm265, %v252, 0
        %269 = vmatprep.subr.bf16.mxu0 0
        %270 = vmatpush1.bf16.msra.mxu0 %v261
        %271 = vmatprep.subr.bf16.mxu0 0
        %272 = vmatpush1.bf16.msra.mxu0 %v262
        %273 = vmatprep.subr.bf16.mxu0 0
        %274 = vmatpush1.bf16.msra.mxu0 0
        %275 = vmatprep.subr.bf16.mxu0 0
        %276 = vmatpush1.bf16.msra.mxu0 0
        %277 = vmatprep.subr.bf16.mxu0 0
        %278 = vmatpush1.bf16.msra.mxu0 0
        %279 = vmatprep.subr.bf16.mxu0 0
        %280 = vmatpush1.bf16.msra.mxu0 0
        %281 = vmatprep.subr.bf16.mxu0 0
        %282 = vmatpush1.bf16.msra.mxu0 0
        %283 = vmatprep.subr.bf16.mxu0 0
        %284 = vmatpush1.bf16.msra.mxu0 0
        %285 = vmatprep.subr.bf16.mxu0 0
        %286 = vmatpush1.bf16.msra.mxu0 0
        %287 = vmatprep.subr.bf16.mxu0 0
        %288 = vmatpush1.bf16.msra.mxu0 0
        %289 = vmatprep.subr.bf16.mxu0 0
        %290 = vmatpush1.bf16.msra.mxu0 0
        %291 = vmatprep.subr.bf16.mxu0 0
        %292 = vmatpush1.bf16.msra.mxu0 0
        %293 = vmatprep.subr.bf16.mxu0 0
        %294 = vmatpush1.bf16.msra.mxu0 0
        %295 = vmatprep.subr.bf16.mxu0 0
        %296 = vmatpush1.bf16.msra.mxu0 0
        %297 = vmatprep.subr.bf16.mxu0 0
        %298 = vmatpush1.bf16.msra.mxu0 0
        %299 = vmatprep.subr.bf16.mxu0 0
        %300 = vmatpush1.bf16.msra.mxu0 0
        %301 = vmatprep.mubr.bf16.mxu0 0
        %302 = vmatmul.mubr.bf16.gmra.mrb[0].mxu0 %v267
        %v303 = vpop.f32.mrb[0].mxu0
        %v304 = vadd.f32 0.0, %v303
        %v305 = vpop.f32.mrb[0].mxu0
        %v306 = vpop.f32.mrb[0].mxu0
        %v307 = vpop.f32.mrb[0].mxu0
        %308 = vdwg.mxu0
        %v309 = vadd.f32 %v251, %v304
        %v310 = vxor.u32 %v309, 2147483648
        %v311 = vmul.f32 %v310, 1.442695
        %v312 = vpow.pop %v311
        %v313 = vadd.f32 %v312, 1.0
        %v314 = vrcp.pop %v313
        %v315 = vmul.f32 1.0, %v314
        %v316 = vtanh.pop %v309
        %v319 = vunpack.c.l.s4 1983009808
        %v320 = vunpack.c.0.s8 %v319
        %v321 = vlaneseq
        %v322 = vshrl.u32 %v321, 7
        %v323 = vsub.s32 %v320, %v322
        %v324 = vrot.slane %v249, %v323
        %325 = vrot.lane.b32.xlu0 %v324, 32
        %v326 = vpop.permute.xlu0 %325
        %v328 = vmul.f32 %v315, %v326
        %330 = vrot.lane.b32.xlu0 %v316, 64
        %v331 = vpop.permute.xlu0 %330
        %v333 = vmul.f32 %v315, %v331
        %335 = vrot.lane.b32.xlu0 %v333, 32
        %v336 = vpop.permute.xlu0 %335
        %v338 = vadd.f32 %v328, %v336
        %v339 = vtanh.pop %v338
        %341 = vrot.lane.b32.xlu0 %v339, 64
        %v342 = vpop.permute.xlu0 %341
        %v344 = vmul.f32 %v315, %v342
        %v347 = vunpack.c.l.s4 1983009808
        %v348 = vunpack.c.0.s8 %v347
        %v349 = vlaneseq
        %v350 = vshrl.u32 %v349, 7
        %v351 = vsub.s32 %v348, %v350
        %v352 = vrot.slane %v344, %v351
        %353 = vrot.lane.b32.xlu0 %v352, 32
        %v354 = vpop.permute.xlu0 %353
        %vm356 = vcmask 254976
        %357 = vst.msk [vmem:[%s234] sm:$0x3] %vm356, %v354
        %s358 = scalar_lea.vmem %s225, 1
        %v359 = vld [vmem:[%s358] sm:$0x1]
        %v360 = vunpack.c.l.bf16 %v359
        %v361 = vpack.c.bf16 %v344, %v344
        %363 = vrot.lane.b32.xlu0 %v361, 32
        %v364 = vpop.permute.xlu0 %363
        %v366 = vsel %vm265, %v364, 0
        %368 = vmatprep.subr.bf16.mxu0 0
        %369 = vmatpush1.bf16.msra.mxu0 %v261
        %370 = vmatprep.subr.bf16.mxu0 0
        %371 = vmatpush1.bf16.msra.mxu0 %v262
        %372 = vmatprep.subr.bf16.mxu0 0
        %373 = vmatpush1.bf16.msra.mxu0 0
        %374 = vmatprep.subr.bf16.mxu0 0
        %375 = vmatpush1.bf16.msra.mxu0 0
        %376 = vmatprep.subr.bf16.mxu0 0
        %377 = vmatpush1.bf16.msra.mxu0 0
        %378 = vmatprep.subr.bf16.mxu0 0
        %379 = vmatpush1.bf16.msra.mxu0 0
        %380 = vmatprep.subr.bf16.mxu0 0
        %381 = vmatpush1.bf16.msra.mxu0 0
        %382 = vmatprep.subr.bf16.mxu0 0
        %383 = vmatpush1.bf16.msra.mxu0 0
        %384 = vmatprep.subr.bf16.mxu0 0
        %385 = vmatpush1.bf16.msra.mxu0 0
        %386 = vmatprep.subr.bf16.mxu0 0
        %387 = vmatpush1.bf16.msra.mxu0 0
        %388 = vmatprep.subr.bf16.mxu0 0
        %389 = vmatpush1.bf16.msra.mxu0 0
        %390 = vmatprep.subr.bf16.mxu0 0
        %391 = vmatpush1.bf16.msra.mxu0 0
        %392 = vmatprep.subr.bf16.mxu0 0
        %393 = vmatpush1.bf16.msra.mxu0 0
        %394 = vmatprep.subr.bf16.mxu0 0
        %395 = vmatpush1.bf16.msra.mxu0 0
        %396 = vmatprep.subr.bf16.mxu0 0
        %397 = vmatpush1.bf16.msra.mxu0 0
        %398 = vmatprep.subr.bf16.mxu0 0
        %399 = vmatpush1.bf16.msra.mxu0 0
        %400 = vmatprep.mubr.bf16.mxu0 0
        %401 = vmatmul.mubr.bf16.gmra.mrb[0].mxu0 %v366
        %v402 = vpop.f32.mrb[0].mxu0
        %v403 = vadd.f32 0.0, %v402
        %v404 = vpop.f32.mrb[0].mxu0
        %v405 = vpop.f32.mrb[0].mxu0
        %v406 = vpop.f32.mrb[0].mxu0
        %407 = vdwg.mxu0
        %v408 = vadd.f32 %v360, %v403
        %v409 = vxor.u32 %v408, 2147483648
        %v410 = vmul.f32 %v409, 1.442695
        %v411 = vpow.pop %v410
        %v412 = vadd.f32 %v411, 1.0
        %v413 = vrcp.pop %v412
        %v414 = vmul.f32 1.0, %v413
        %v415 = vtanh.pop %v408
        %v416 = vmul.f32 %v414, %v338
        %418 = vrot.lane.b32.xlu0 %v415, 64
        %v419 = vpop.permute.xlu0 %418
        %v421 = vmul.f32 %v414, %v419
        %423 = vrot.lane.b32.xlu0 %v421, 32
        %v424 = vpop.permute.xlu0 %423
        %v426 = vadd.f32 %v416, %v424
        %v427 = vtanh.pop %v426
        %429 = vrot.lane.b32.xlu0 %v427, 64
        %v430 = vpop.permute.xlu0 %429
        %v432 = vmul.f32 %v414, %v430
        %v435 = vunpack.c.l.s4 1983009808
        %v436 = vunpack.c.0.s8 %v435
        %v437 = vlaneseq
        %v438 = vshrl.u32 %v437, 7
        %v439 = vsub.s32 %v436, %v438
        %v440 = vrot.slane %v432, %v439
        %441 = vrot.lane.b32.xlu0 %v440, 32
        %v442 = vpop.permute.xlu0 %441
        %s444 = scalar_lea.vmem %s234, 2
        %445 = vst.msk [vmem:[%s444] sm:$0x3] %vm356, %v442
        %s446 = scalar_lea.vmem %s225, 2
        %v447 = vld [vmem:[%s446] sm:$0x1]
        %v448 = vunpack.c.l.bf16 %v447
        %v449 = vpack.c.bf16 %v432, %v432
        %451 = vrot.lane.b32.xlu0 %v449, 32
        %v452 = vpop.permute.xlu0 %451
        %v454 = vsel %vm265, %v452, 0
        %456 = vmatprep.subr.bf16.mxu0 0
        %457 = vmatpush1.bf16.msra.mxu0 %v261
        %458 = vmatprep.subr.bf16.mxu0 0
        %459 = vmatpush1.bf16.msra.mxu0 %v262
        %460 = vmatprep.subr.bf16.mxu0 0
        %461 = vmatpush1.bf16.msra.mxu0 0
        %462 = vmatprep.subr.bf16.mxu0 0
        %463 = vmatpush1.bf16.msra.mxu0 0
        %464 = vmatprep.subr.bf16.mxu0 0
        %465 = vmatpush1.bf16.msra.mxu0 0
        %466 = vmatprep.subr.bf16.mxu0 0
        %467 = vmatpush1.bf16.msra.mxu0 0
        %468 = vmatprep.subr.bf16.mxu0 0
        %469 = vmatpush1.bf16.msra.mxu0 0
        %470 = vmatprep.subr.bf16.mxu0 0
        %471 = vmatpush1.bf16.msra.mxu0 0
        %472 = vmatprep.subr.bf16.mxu0 0
        %473 = vmatpush1.bf16.msra.mxu0 0
        %474 = vmatprep.subr.bf16.mxu0 0
        %475 = vmatpush1.bf16.msra.mxu0 0
        %476 = vmatprep.subr.bf16.mxu0 0
        %477 = vmatpush1.bf16.msra.mxu0 0
        %478 = vmatprep.subr.bf16.mxu0 0
        %479 = vmatpush1.bf16.msra.mxu0 0
        %480 = vmatprep.subr.bf16.mxu0 0
        %481 = vmatpush1.bf16.msra.mxu0 0
        %482 = vmatprep.subr.bf16.mxu0 0
        %483 = vmatpush1.bf16.msra.mxu0 0
        %484 = vmatprep.subr.bf16.mxu0 0
        %485 = vmatpush1.bf16.msra.mxu0 0
        %486 = vmatprep.subr.bf16.mxu0 0
        %487 = vmatpush1.bf16.msra.mxu0 0
        %488 = vmatprep.mubr.bf16.mxu0 0
        %489 = vmatmul.mubr.bf16.gmra.mrb[0].mxu0 %v454
        %v490 = vpop.f32.mrb[0].mxu0
        %v491 = vadd.f32 0.0, %v490
        %v492 = vpop.f32.mrb[0].mxu0
        %v493 = vpop.f32.mrb[0].mxu0
        %v494 = vpop.f32.mrb[0].mxu0
        %495 = vdwg.mxu0
        %v496 = vadd.f32 %v448, %v491
        %v497 = vxor.u32 %v496, 2147483648
        %v498 = vmul.f32 %v497, 1.442695
        %v499 = vpow.pop %v498
        %v500 = vadd.f32 %v499, 1.0
        %v501 = vrcp.pop %v500
        %v502 = vmul.f32 1.0, %v501
        %v503 = vtanh.pop %v496
        %v504 = vmul.f32 %v502, %v426
        %506 = vrot.lane.b32.xlu0 %v503, 64
        %v507 = vpop.permute.xlu0 %506
        %v509 = vmul.f32 %v502, %v507
        %511 = vrot.lane.b32.xlu0 %v509, 32
        %v512 = vpop.permute.xlu0 %511
        %v514 = vadd.f32 %v504, %v512
        %v515 = vtanh.pop %v514
        %517 = vrot.lane.b32.xlu0 %v515, 64
        %v518 = vpop.permute.xlu0 %517
        %v520 = vmul.f32 %v502, %v518
        %v523 = vunpack.c.l.s4 1983009808
        %v524 = vunpack.c.0.s8 %v523
        %v525 = vlaneseq
        %v526 = vshrl.u32 %v525, 7
        %v527 = vsub.s32 %v524, %v526
        %v528 = vrot.slane %v520, %v527
        %529 = vrot.lane.b32.xlu0 %v528, 32
        %v530 = vpop.permute.xlu0 %529
        %s532 = scalar_lea.vmem %s234, 4
        %533 = vst.msk [vmem:[%s532] sm:$0x3] %vm356, %v530
        %s534 = scalar_lea.vmem %s225, 3
        %v535 = vld [vmem:[%s534] sm:$0x1]
        %v536 = vunpack.c.l.bf16 %v535
        %v537 = vpack.c.bf16 %v520, %v520
        %539 = vrot.lane.b32.xlu0 %v537, 32
        %v540 = vpop.permute.xlu0 %539
        %v542 = vsel %vm265, %v540, 0
        %544 = vmatprep.subr.bf16.mxu0 0
        %545 = vmatpush1.bf16.msra.mxu0 %v261
        %546 = vmatprep.subr.bf16.mxu0 0
        %547 = vmatpush1.bf16.msra.mxu0 %v262
        %548 = vmatprep.subr.bf16.mxu0 0
        %549 = vmatpush1.bf16.msra.mxu0 0
        %550 = vmatprep.subr.bf16.mxu0 0
        %551 = vmatpush1.bf16.msra.mxu0 0
        %552 = vmatprep.subr.bf16.mxu0 0
        %553 = vmatpush1.bf16.msra.mxu0 0
        %554 = vmatprep.subr.bf16.mxu0 0
        %555 = vmatpush1.bf16.msra.mxu0 0
        %556 = vmatprep.subr.bf16.mxu0 0
        %557 = vmatpush1.bf16.msra.mxu0 0
        %558 = vmatprep.subr.bf16.mxu0 0
        %559 = vmatpush1.bf16.msra.mxu0 0
        %560 = vmatprep.subr.bf16.mxu0 0
        %561 = vmatpush1.bf16.msra.mxu0 0
        %562 = vmatprep.subr.bf16.mxu0 0
        %563 = vmatpush1.bf16.msra.mxu0 0
        %564 = vmatprep.subr.bf16.mxu0 0
        %565 = vmatpush1.bf16.msra.mxu0 0
        %566 = vmatprep.subr.bf16.mxu0 0
        %567 = vmatpush1.bf16.msra.mxu0 0
        %568 = vmatprep.subr.bf16.mxu0 0
        %569 = vmatpush1.bf16.msra.mxu0 0
        %570 = vmatprep.subr.bf16.mxu0 0
        %571 = vmatpush1.bf16.msra.mxu0 0
        %572 = vmatprep.subr.bf16.mxu0 0
        %573 = vmatpush1.bf16.msra.mxu0 0
        %574 = vmatprep.subr.bf16.mxu0 0
        %575 = vmatpush1.bf16.msra.mxu0 0
        %576 = vmatprep.mubr.bf16.mxu0 0
        %577 = vmatmul.mubr.bf16.gmra.mrb[0].mxu0 %v542
        %v578 = vpop.f32.mrb[0].mxu0
        %v579 = vadd.f32 0.0, %v578
        %v580 = vpop.f32.mrb[0].mxu0
        %v581 = vpop.f32.mrb[0].mxu0
        %v582 = vpop.f32.mrb[0].mxu0
        %583 = vdwg.mxu0
        %v584 = vadd.f32 %v536, %v579
        %v585 = vxor.u32 %v584, 2147483648
        %v586 = vmul.f32 %v585, 1.442695
        %v587 = vpow.pop %v586
        %v588 = vadd.f32 %v587, 1.0
        %v589 = vrcp.pop %v588
        %v590 = vmul.f32 1.0, %v589
        %v591 = vtanh.pop %v584
        %v592 = vmul.f32 %v590, %v514
        %594 = vrot.lane.b32.xlu0 %v591, 64
        %v595 = vpop.permute.xlu0 %594
        %v597 = vmul.f32 %v590, %v595
        %599 = vrot.lane.b32.xlu0 %v597, 32
        %v600 = vpop.permute.xlu0 %599
        %v602 = vadd.f32 %v592, %v600
        %v603 = vtanh.pop %v602
        %605 = vrot.lane.b32.xlu0 %v603, 64
        %v606 = vpop.permute.xlu0 %605
        %v608 = vmul.f32 %v590, %v606
        %v611 = vunpack.c.l.s4 1983009808
        %v612 = vunpack.c.0.s8 %v611
        %v613 = vlaneseq
        %v614 = vshrl.u32 %v613, 7
        %v615 = vsub.s32 %v612, %v614
        %v616 = vrot.slane %v608, %v615
        %617 = vrot.lane.b32.xlu0 %v616, 32
        %v618 = vpop.permute.xlu0 %617
        %s620 = scalar_lea.vmem %s234, 6
        %621 = vst.msk [vmem:[%s620] sm:$0x3] %vm356, %v618
        %622 = vst.msk [vmem:[#allocation2] sm:$0x3] %vm356, %v618
        %v625 = vunpack.c.l.s4 1983009808
        %v626 = vunpack.c.0.s8 %v625
        %v627 = vlaneseq
        %v628 = vshrl.u32 %v627, 7
        %v629 = vsub.s32 %v626, %v628
        %v630 = vrot.slane %v602, %v629
        %631 = vrot.lane.b32.xlu0 %v630, 96
        %v632 = vpop.permute.xlu0 %631
        %634 = vst.msk [vmem:[#allocation4] sm:$0x3] %vm356, %v632
        %s635 = smul.u32 4, %s23
        %p636 = scmp.lt.s32.totalorder %s635, 7
        %s637 = scalar_select %p636, %s635, 7
        %p638 = scmp.lt.s32.totalorder %s22, 0
        %s639 = scalar_select %p638, %s22, 0
        %s640 = sadd.s32 %s639, %s637
        %s641 = smul.addr %s640, 2
        %s642 = scalar_lea.vmem %s2, %s641
        // Predicated region
        $region33: #{encoder_forward.1} parent=27 // pred_check
          %p643 = pneg %p99
        $region34: #{encoder_forward.1} parent=27 // pred_check_branch
          %645 = sbr.rel (%p643) target = $region36
        $region35: #{encoder_forward.1} parent=27 // pred_region
          %s646 = smul.u32 4, %s23
        $region36: #{encoder_forward.1} parent=27 // pred_fallthru
          _
        // Predicated region
        $region37: #{encoder_forward.1} parent=27 // pred_check
          %p647 = pneg %p125
        $region38: #{encoder_forward.1} parent=27 // pred_check_branch
          %649 = sbr.rel (%p647) target = $region40
        $region39: #{encoder_forward.1} parent=27 // pred_region
          %s651 = ssub.s32 32, 32
          %652 = vsyncadd [#allocation3], %s651
          %s653 = smul.addr %s22, 32
          %s654 = scalar_lea.hbm %s3, %s653
          %s656 = sshll.u32 [#allocation2], 4
          %s657 = int_to_ptr.vmem [resolvable:$true] %s656
          %659 = dma.vmem_to_hbm [thread:$0]  %s657, 32, %s654, [#allocation3]
        $region40: #{encoder_forward.1} parent=27 // pred_fallthru
          _
        // Predicated region
        $region41: #{encoder_forward.1} parent=27 // pred_check
          %p660 = pneg %p151
        $region42: #{encoder_forward.1} parent=27 // pred_check_branch
          %662 = sbr.rel (%p660) target = $region44
        $region43: #{encoder_forward.1} parent=27 // pred_region
          %s664 = ssub.s32 32, 32
          %665 = vsyncadd [#allocation5], %s664
          %s666 = smul.addr %s22, 32
          %s667 = scalar_lea.hbm %s4, %s666
          %s669 = sshll.u32 [#allocation4], 4
          %s670 = int_to_ptr.vmem [resolvable:$true] %s669
          %672 = dma.vmem_to_hbm [thread:$0]  %s670, 32, %s667, [#allocation5]
        $region44: #{encoder_forward.1} parent=27 // pred_fallthru
          _
        // Predicated region
        $region45: #{encoder_forward.1} parent=27 // pred_check
          %p673 = pneg %p125
        $region46: #{encoder_forward.1} parent=27 // pred_check_branch
          %675 = sbr.rel (%p673) target = $region48
        $region47: #{encoder_forward.1} parent=27 // pred_region
          %676 = dma.done [#allocation3], 32
        $region48: #{encoder_forward.1} parent=27 // pred_fallthru
          _
        // Predicated region
        $region49: #{encoder_forward.1} parent=27 // pred_check
          %p677 = pneg %p151
        $region50: #{encoder_forward.1} parent=27 // pred_check_branch
          %679 = sbr.rel (%p677) target = $region52
        $region51: #{encoder_forward.1} parent=27 // pred_region
          %680 = dma.done [#allocation5], 32
        $region52: #{encoder_forward.1} parent=27 // pred_fallthru
          _
      $region28: #{encoder_forward.1} parent=5 // pred_fallthru
        _
      %p681 = scmp.le.s32.totalorder 2, %s13
      // Predicated region
      $region53: #{encoder_forward.1} parent=5 // pred_check
        %p682 = pneg %p681
      $region54: #{encoder_forward.1} parent=5 // pred_check_branch
        %684 = sbr.rel (%p682) target = $region56
      $region55: #{encoder_forward.1} parent=5 // pred_region
        %s685 = ssub.s32 %s13, 2
        // Predicated region
        $region57: #{encoder_forward.1} parent=55 // pred_check
          %p686 = pneg %p105
        $region58: #{encoder_forward.1} parent=55 // pred_check_branch
          %688 = sbr.rel (%p686) target = $region60
        $region59: #{encoder_forward.1} parent=55 // pred_region
          %s689 = smul.u32 4, %s25
          %p690 = scmp.lt.s32.totalorder %s689, 7
          %s691 = scalar_select %p690, %s689, 7
          %p692 = scmp.lt.s32.totalorder %s24, 0
          %s693 = scalar_select %p692, %s24, 0
          %s694 = sadd.s32 %s693, %s691
          %s695 = smul.addr %s694, 2
          %s696 = scalar_lea.vmem %s2, %s695
        $region60: #{encoder_forward.1} parent=55 // pred_fallthru
          _
      $region56: #{encoder_forward.1} parent=5 // pred_fallthru
        _
    $region6: #{encoder_forward.1} parent=1 // loop_footer
      %s17 = sadd.s32 1, %s13
    $region7: #{encoder_forward.1} parent=1 // loop_footer_branch
      %12 = sbr.rel target = $region3
    $region8: #{encoder_forward.1} parent=1 // loop_exit
      _
    %697 = vsyncpa [#allocation3], 1
    %s698 = scalar_lea.sflag [#allocation3], 1
    %699 = vsyncpa %s698, 1
    %700 = vsyncpa [#allocation5], 1

</llo_original>
